<compile_context>
chip_gen: v6e
topology: v6e:2x2x1
jax: 0.10.0
libtpu: 0.0.40
codegen_flags: <defaults>
</compile_context>

<pallas_src>
import functools

import jax
import jax.numpy as jnp
from jax.experimental import pallas as pl
from jax.experimental.pallas import tpu as pltpu

STATE_DIM = 14
STATE_DIM_PAD = 16      # layer-1 contraction dim zero-padded to a sublane-friendly 16
HIDDEN_DIM = 128
EMB_DIM = 64
BN_EPS = 1e-5


def state_encoder_kernel(x_ref, w1_ref, b1_ref, w2_ref, b2_ref, w3_ref, b3_ref, o_ref):
    # x arrives as raw f32 (tb, 14); zero-pad the contraction dim to 16 and cast to bf16
    # in-kernel (VPU/XLU work hidden under MXU/DMA slack) instead of a separate XLA pass.
    x = x_ref[...]
    pad = jnp.zeros((x.shape[0], STATE_DIM_PAD - STATE_DIM), x.dtype)
    x16 = jnp.concatenate([x, pad], axis=-1).astype(jnp.bfloat16)

    # Layer 1: Linear(16 -> 128) [eval-mode BN folded into W/b] + ReLU
    h = jnp.dot(x16, w1_ref[...], preferred_element_type=jnp.float32) + b1_ref[...]
    h = jnp.maximum(h, 0.0)
    # TODO(synk): nn.Dropout is identity in eval mode; train-mode dropout not implemented here.
    # Layer 2: Linear(128 -> 128) [BN folded] + ReLU
    h = jnp.dot(h.astype(jnp.bfloat16), w2_ref[...],
                preferred_element_type=jnp.float32) + b2_ref[...]
    h = jnp.maximum(h, 0.0)
    # Layer 3: Linear(128 -> 64) [BN folded] + ReLU
    h = jnp.dot(h.astype(jnp.bfloat16), w3_ref[...],
                preferred_element_type=jnp.float32) + b3_ref[...]
    h = jnp.maximum(h, 0.0)
    # TODO(synk): on v5e a lane-dense (tb//2, 128) repack of the output would halve masked
    # vst pressure; skipped here (EMB_DIM=64 store already bf16, minor on v6e/v7x).
    o_ref[...] = h.astype(o_ref.dtype)


def _round_up(n, m):
    return (n + m - 1) // m * m


def fold_bn(w, b, gamma, beta, mean, var, eps=BN_EPS):
    """Exactly fold eval-mode BatchNorm1d into the preceding Linear (W:(in,out), b:(1,out))."""
    scale = gamma / jnp.sqrt(var + eps)          # (1, out)
    shift = beta - mean * scale                  # (1, out)
    return w * scale, b * scale + shift


def prepare_params(params):
    """From raw per-layer (w, b, gamma, beta, running_mean, running_var) params (Linear
    weights pre-transposed to (in,out)) produce kernel-ready params: BN-folded bf16
    weights + f32 biases, with W1 zero-padded on the input dim from 14 to 16."""
    (w1, b1, g1, be1, m1, v1,
     w2, b2, g2, be2, m2, v2,
     w3, b3, g3, be3, m3, v3) = params
    w1, b1 = fold_bn(w1, b1, g1, be1, m1, v1)
    w2, b2 = fold_bn(w2, b2, g2, be2, m2, v2)
    w3, b3 = fold_bn(w3, b3, g3, be3, m3, v3)
    w1 = jnp.pad(w1, ((0, STATE_DIM_PAD - STATE_DIM), (0, 0)))
    return [w1.astype(jnp.bfloat16), b1.astype(jnp.float32),
            w2.astype(jnp.bfloat16), b2.astype(jnp.float32),
            w3.astype(jnp.bfloat16), b3.astype(jnp.float32)]


@functools.partial(jax.jit, static_argnames=("block_b", "out_dtype"))
def state_encoder(x, prep_params, *, block_b=4096, out_dtype=jnp.bfloat16):
    """x: (B, STATE_DIM) float32; prep_params: output of prepare_params.
    Returns (B, EMB_DIM) in out_dtype (default bfloat16)."""
    B = x.shape[0]
    # Big batch tile (kernel is step-overhead/HBM bound, ~2 KiB VMEM per row incl. double
    # buffers), but at most ceil(B/2) so the "parallel" grid axis has >=2 steps for v7x's
    # two TensorCores; multiple of 8 for f32 sublane alignment. block_b=4096 keeps the
    # footprint well under the 32 MiB scoped-VMEM default (v7x physical VMEM is 64 MiB).
    tb = min(block_b, max(8, _round_up(pl.cdiv(B, 2), 8)))
    grid_b = pl.cdiv(B, tb)   # no batch padding: Pallas masks the ragged last block

    w1, b1, w2, b2, w3, b3 = prep_params

    # Weights/biases stay VMEM-resident via constant index_maps across the batch grid.
    # TODO(synk): pipeline_mode=pl.Buffered(1) would drop their pointless second buffer
    # (~37 KiB); left at the default for compatibility.
    def resident(shape):
        return pl.BlockSpec(shape, lambda i: (0, 0))

    out_bytes = jnp.dtype(out_dtype).itemsize
    flops = 2 * B * (STATE_DIM_PAD * HIDDEN_DIM
                     + HIDDEN_DIM * HIDDEN_DIM
                     + HIDDEN_DIM * EMB_DIM)
    bytes_accessed = (x.size * x.dtype.itemsize + B * EMB_DIM * out_bytes
                      + (w1.size + w2.size + w3.size) * 2
                      + (b1.size + b2.size + b3.size) * 4)

    return pl.pallas_call(
        state_encoder_kernel,
        out_shape=jax.ShapeDtypeStruct((B, EMB_DIM), out_dtype),
        grid_spec=pltpu.PrefetchScalarGridSpec(
            num_scalar_prefetch=0,
            grid=(grid_b,),
            in_specs=[
                pl.BlockSpec((tb, STATE_DIM), lambda i: (i, 0)),   # x: raw f32, batch-tiled
                resident((STATE_DIM_PAD, HIDDEN_DIM)),             # W1 (bf16), resident
                resident((1, HIDDEN_DIM)),                         # b1 (f32)
                resident((HIDDEN_DIM, HIDDEN_DIM)),                # W2
                resident((1, HIDDEN_DIM)),                         # b2
                resident((HIDDEN_DIM, EMB_DIM)),                   # W3
                resident((1, EMB_DIM)),                            # b3
            ],
            out_specs=pl.BlockSpec((tb, EMB_DIM), lambda i: (i, 0)),
        ),
        compiler_params=pltpu.CompilerParams(
            dimension_semantics=("parallel",),
        ),
        cost_estimate=pl.CostEstimate(
            flops=flops, transcendentals=0, bytes_accessed=int(bytes_accessed)),
    )(x, w1, b1, w2, b2, w3, b3)


def init_params(key):
    """Raw params mimicking PyTorch: Linear default init (weights transposed to (in,out)),
    BatchNorm1d with (slightly randomized) gamma/beta/running stats so the fold is exercised."""
    def linear(k, fan_in, fan_out):
        k1, k2 = jax.random.split(k)
        bound = 1.0 / (fan_in ** 0.5)
        w = jax.random.uniform(k1, (fan_in, fan_out), jnp.float32, -bound, bound)
        b = jax.random.uniform(k2, (1, fan_out), jnp.float32, -bound, bound)
        return w, b

    def bn(k, dim):
        k1, k2, k3, k4 = jax.random.split(k, 4)
        gamma = jax.random.uniform(k1, (1, dim), jnp.float32, 0.5, 1.5)
        beta = jax.random.uniform(k2, (1, dim), jnp.float32, -0.1, 0.1)
        mean = 0.1 * jax.random.normal(k3, (1, dim), jnp.float32)
        var = jax.random.uniform(k4, (1, dim), jnp.float32, 0.5, 1.5)
        return gamma, beta, mean, var

    k1, k2, k3, k4, k5, k6 = jax.random.split(key, 6)
    w1, b1 = linear(k1, STATE_DIM, HIDDEN_DIM)
    g1, be1, m1, v1 = bn(k4, HIDDEN_DIM)
    w2, b2 = linear(k2, HIDDEN_DIM, HIDDEN_DIM)
    g2, be2, m2, v2 = bn(k5, HIDDEN_DIM)
    w3, b3 = linear(k3, HIDDEN_DIM, EMB_DIM)
    g3, be3, m3, v3 = bn(k6, EMB_DIM)
    return [w1, b1, g1, be1, m1, v1,
            w2, b2, g2, be2, m2, v2,
            w3, b3, g3, be3, m3, v3]


def state_encoder_ref(x, prep):
    """Plain-JAX reference mirroring the kernel math (bf16 operands, f32 accumulation)."""
    w1, b1, w2, b2, w3, b3 = prep
    xp = jnp.pad(x, ((0, 0), (0, STATE_DIM_PAD - STATE_DIM))).astype(jnp.bfloat16)
    h = jnp.maximum(jnp.dot(xp, w1, preferred_element_type=jnp.float32) + b1, 0.0)
    h = jnp.maximum(jnp.dot(h.astype(jnp.bfloat16), w2,
                            preferred_element_type=jnp.float32) + b2, 0.0)
    h = jnp.maximum(jnp.dot(h.astype(jnp.bfloat16), w3,
                            preferred_element_type=jnp.float32) + b3, 0.0)
    return h


def state_encoder_f32_ref(x, params):
    """Full-precision reference of the original module semantics (eval mode)."""
    (w1, b1, g1, be1, m1, v1,
     w2, b2, g2, be2, m2, v2,
     w3, b3, g3, be3, m3, v3) = params

    def layer(h, w, b, g, be, m, v):
        h = h @ w + b
        h = (h - m) / jnp.sqrt(v + BN_EPS) * g + be
        return jnp.maximum(h, 0.0)

    h = layer(x, w1, b1, g1, be1, m1, v1)
    h = layer(h, w2, b2, g2, be2, m2, v2)
    h = layer(h, w3, b3, g3, be3, m3, v3)
    return h


if __name__ == "__main__":
    key = jax.random.PRNGKey(0)
    k_params, k_x = jax.random.split(key)
    params = init_params(k_params)
    prep = prepare_params(params)

    # Small test (single grid step).
    B = 8
    x = jax.random.normal(k_x, (B, STATE_DIM), jnp.float32)
    out = jax.block_until_ready(state_encoder(x, prep))
    assert out.shape == (B, EMB_DIM), out.shape

    # Exact-path check (same bf16 operands / f32 accumulation / bf16 store as the kernel).
    ref_bf16 = state_encoder_ref(x, prep)
    assert jnp.allclose(out.astype(jnp.float32), ref_bf16, atol=2e-2, rtol=2e-2), \
        "mismatch vs bf16 reference"

    # Semantic check vs the original f32 Linear->BN->ReLU module (bf16 rounding tolerance).
    ref_f32 = state_encoder_f32_ref(x, params)
    assert jnp.allclose(out.astype(jnp.float32), ref_f32, atol=1e-1, rtol=1e-1), \
        "mismatch vs f32 module reference"

    # Ragged-batch test: multiple grid steps + masked partial last block (B not multiple of tb).
    B2 = 19
    x2 = jax.random.normal(jax.random.PRNGKey(1), (B2, STATE_DIM), jnp.float32)
    out2 = jax.block_until_ready(state_encoder(x2, prep, block_b=8))
    assert out2.shape == (B2, EMB_DIM), out2.shape
    ref2 = state_encoder_ref(x2, prep)
    assert jnp.allclose(out2.astype(jnp.float32), ref2, atol=2e-2, rtol=2e-2), \
        "mismatch vs bf16 reference (ragged batch)"

    print("KERNEL_OK")
</pallas_src>

<mosaic_0001>
module attributes {stable_mosaic.version = 11 : i64} {
  func.func @state_encoder_kernel(%arg0: i32, %arg1: memref<8x14xf32, #tpu.memory_space<vmem>>, %arg2: memref<16x128xbf16, #tpu.memory_space<vmem>>, %arg3: memref<1x128xf32, #tpu.memory_space<vmem>>, %arg4: memref<128x128xbf16, #tpu.memory_space<vmem>>, %arg5: memref<1x128xf32, #tpu.memory_space<vmem>>, %arg6: memref<128x64xbf16, #tpu.memory_space<vmem>>, %arg7: memref<1x64xf32, #tpu.memory_space<vmem>>, %arg8: memref<8x64xbf16, #tpu.memory_space<vmem>>) attributes {dimension_semantics = [#tpu.dimension_semantics<parallel>], iteration_bounds = array<i64: 1>, scalar_prefetch = 0 : i64, scratch_operands = 0 : i64, tpu.core_type = #tpu.core_type<tc>, window_params = [{transform_indices = @transform_0, window_bounds = array<i64: 8, 14>}, {pipeline_mode = #tpu.pipeline_mode<synchronous>, transform_indices = @transform_1, window_bounds = array<i64: 16, 128>}, {pipeline_mode = #tpu.pipeline_mode<synchronous>, transform_indices = @transform_2, window_bounds = array<i64: 1, 128>}, {pipeline_mode = #tpu.pipeline_mode<synchronous>, transform_indices = @transform_3, window_bounds = array<i64: 128, 128>}, {pipeline_mode = #tpu.pipeline_mode<synchronous>, transform_indices = @transform_4, window_bounds = array<i64: 1, 128>}, {pipeline_mode = #tpu.pipeline_mode<synchronous>, transform_indices = @transform_5, window_bounds = array<i64: 128, 64>}, {pipeline_mode = #tpu.pipeline_mode<synchronous>, transform_indices = @transform_6, window_bounds = array<i64: 1, 64>}, {transform_indices = @transform_7, window_bounds = array<i64: 8, 64>}]} {
    %c0 = arith.constant 0 : index
    %c0_0 = arith.constant 0 : index
    %0 = vector.load %arg1[%c0, %c0_0] : memref<8x14xf32, #tpu.memory_space<vmem>>, vector<8x14xf32>
    %cst = arith.constant 0.000000e+00 : f32
    %1 = vector.broadcast %cst : f32 to vector<8x2xf32>
    %2 = tpu.concatenate %0, %1 in 1 : vector<8x14xf32>, vector<8x2xf32> -> vector<8x16xf32>
    %3 = arith.truncf %2 : vector<8x16xf32> to vector<8x16xbf16>
    %c0_1 = arith.constant 0 : index
    %c0_2 = arith.constant 0 : index
    %4 = vector.load %arg2[%c0_1, %c0_2] : memref<16x128xbf16, #tpu.memory_space<vmem>>, vector<16x128xbf16>
    %cst_3 = arith.constant dense<0.000000e+00> : vector<8x128xf32>
    %5 = tpu.matmul %3, %4, %cst_3 {dimension_numbers = #tpu.dot_dimension_numbers<[1], [0], [0], [1], [0, 0, 1, 1], [], []>} : vector<8x16xbf16>, vector<16x128xbf16>, vector<8x128xf32> -> vector<8x128xf32>
    %c0_4 = arith.constant 0 : index
    %c0_5 = arith.constant 0 : index
    %6 = vector.load %arg3[%c0_4, %c0_5] : memref<1x128xf32, #tpu.memory_space<vmem>>, vector<1x128xf32>
    %7 = vector.broadcast %6 : vector<1x128xf32> to vector<8x128xf32>
    %8 = arith.addf %5, %7 : vector<8x128xf32>
    %cst_6 = arith.constant 0.000000e+00 : f32
    %9 = vector.broadcast %cst_6 : f32 to vector<8x128xf32>
    %10 = arith.maximumf %8, %9 : vector<8x128xf32>
    %11 = arith.truncf %10 : vector<8x128xf32> to vector<8x128xbf16>
    %c0_7 = arith.constant 0 : index
    %c0_8 = arith.constant 0 : index
    %12 = vector.load %arg4[%c0_7, %c0_8] : memref<128x128xbf16, #tpu.memory_space<vmem>>, vector<128x128xbf16>
    %cst_9 = arith.constant dense<0.000000e+00> : vector<8x128xf32>
    %13 = tpu.matmul %11, %12, %cst_9 {dimension_numbers = #tpu.dot_dimension_numbers<[1], [0], [0], [1], [0, 0, 1, 1], [], []>} : vector<8x128xbf16>, vector<128x128xbf16>, vector<8x128xf32> -> vector<8x128xf32>
    %c0_10 = arith.constant 0 : index
    %c0_11 = arith.constant 0 : index
    %14 = vector.load %arg5[%c0_10, %c0_11] : memref<1x128xf32, #tpu.memory_space<vmem>>, vector<1x128xf32>
    %15 = vector.broadcast %14 : vector<1x128xf32> to vector<8x128xf32>
    %16 = arith.addf %13, %15 : vector<8x128xf32>
    %cst_12 = arith.constant 0.000000e+00 : f32
    %17 = vector.broadcast %cst_12 : f32 to vector<8x128xf32>
    %18 = arith.maximumf %16, %17 : vector<8x128xf32>
    %19 = arith.truncf %18 : vector<8x128xf32> to vector<8x128xbf16>
    %c0_13 = arith.constant 0 : index
    %c0_14 = arith.constant 0 : index
    %20 = vector.load %arg6[%c0_13, %c0_14] : memref<128x64xbf16, #tpu.memory_space<vmem>>, vector<128x64xbf16>
    %cst_15 = arith.constant dense<0.000000e+00> : vector<8x64xf32>
    %21 = tpu.matmul %19, %20, %cst_15 {dimension_numbers = #tpu.dot_dimension_numbers<[1], [0], [0], [1], [0, 0, 1, 1], [], []>} : vector<8x128xbf16>, vector<128x64xbf16>, vector<8x64xf32> -> vector<8x64xf32>
    %c0_16 = arith.constant 0 : index
    %c0_17 = arith.constant 0 : index
    %22 = vector.load %arg7[%c0_16, %c0_17] : memref<1x64xf32, #tpu.memory_space<vmem>>, vector<1x64xf32>
    %23 = vector.broadcast %22 : vector<1x64xf32> to vector<8x64xf32>
    %24 = arith.addf %21, %23 : vector<8x64xf32>
    %cst_18 = arith.constant 0.000000e+00 : f32
    %25 = vector.broadcast %cst_18 : f32 to vector<8x64xf32>
    %26 = arith.maximumf %24, %25 : vector<8x64xf32>
    %27 = arith.truncf %26 : vector<8x64xf32> to vector<8x64xbf16>
    %c0_19 = arith.constant 0 : index
    %c0_20 = arith.constant 0 : index
    %28 = vector.load %arg8[%c0_19, %c0_20] : memref<8x64xbf16, #tpu.memory_space<vmem>>, vector<8x64xbf16>
    tpu.vector_store %arg8[%c0_19, %c0_20], %27 {strides = array<i32>} : memref<8x64xbf16, #tpu.memory_space<vmem>>, vector<8x64xbf16>,
    return
  }
  func.func @transform_0(%arg0: i32) -> (i32, i32) {
    %c0_i32 = arith.constant 0 : i32
    %c0_i32_0 = arith.constant 0 : i32
    return %arg0, %c0_i32 : i32, i32
  }
  func.func @transform_1(%arg0: i32) -> (i32, i32) {
    %c0_i32 = arith.constant 0 : i32
    %c0_i32_0 = arith.constant 0 : i32
    %c0_i32_1 = arith.constant 0 : i32
    return %c0_i32, %c0_i32_0 : i32, i32
  }
  func.func @transform_2(%arg0: i32) -> (i32, i32) {
    %c0_i32 = arith.constant 0 : i32
    %c0_i32_0 = arith.constant 0 : i32
    %c0_i32_1 = arith.constant 0 : i32
    return %c0_i32, %c0_i32_0 : i32, i32
  }
  func.func @transform_3(%arg0: i32) -> (i32, i32) {
    %c0_i32 = arith.constant 0 : i32
    %c0_i32_0 = arith.constant 0 : i32
    %c0_i32_1 = arith.constant 0 : i32
    return %c0_i32, %c0_i32_0 : i32, i32
  }
  func.func @transform_4(%arg0: i32) -> (i32, i32) {
    %c0_i32 = arith.constant 0 : i32
    %c0_i32_0 = arith.constant 0 : i32
    %c0_i32_1 = arith.constant 0 : i32
    return %c0_i32, %c0_i32_0 : i32, i32
  }
  func.func @transform_5(%arg0: i32) -> (i32, i32) {
    %c0_i32 = arith.constant 0 : i32
    %c0_i32_0 = arith.constant 0 : i32
    %c0_i32_1 = arith.constant 0 : i32
    return %c0_i32, %c0_i32_0 : i32, i32
  }
  func.func @transform_6(%arg0: i32) -> (i32, i32) {
    %c0_i32 = arith.constant 0 : i32
    %c0_i32_0 = arith.constant 0 : i32
    %c0_i32_1 = arith.constant 0 : i32
    return %c0_i32, %c0_i32_0 : i32, i32
  }
  func.func @transform_7(%arg0: i32) -> (i32, i32) {
    %c0_i32 = arith.constant 0 : i32
    %c0_i32_0 = arith.constant 0 : i32
    return %arg0, %c0_i32 : i32, i32
  }
}

</mosaic_0001>

<llo_original>
// kernel: state_encoder.1
$region0: #{state_encoder.1}
  #allocation0 [shape = 'u32[]', space=smem, size = 0x4, offset = 0x4, fixed_abs, tag = 'smem constant byte address 0x4 - core index']
  #allocation1 [shape = 'u32[144,128]{1,0:T(1,128)}', space=vmem, size = 0x12000, scoped, tag = 'internal scratch']
  %s0 = inlined_call_operand.vmem [shape: f32[8,14], index: 0, kind: input, shape index: {}]
  %s1 = inlined_call_operand.vmem [shape: bf16[16,128], index: 1, kind: input, shape index: {}]
  %s2 = inlined_call_operand.vmem [shape: f32[1,128], index: 2, kind: input, shape index: {}]
  %s3 = inlined_call_operand.vmem [shape: bf16[128,128], index: 3, kind: input, shape index: {}]
  %s4 = inlined_call_operand.vmem [shape: f32[1,128], index: 4, kind: input, shape index: {}]
  %s5 = inlined_call_operand.vmem [shape: bf16[128,64], index: 5, kind: input, shape index: {}]
  %s6 = inlined_call_operand.vmem [shape: f32[1,64], index: 6, kind: input, shape index: {}]
  %s7 = inlined_call_operand.hbm [shape: bf16[8,64], index: 7, kind: output, shape index: {}]
  %s8 = sld [smem:[#allocation0]]
  $region38: #{state_encoder.1} parent=0
    _
  %s10 = ssub.s32 1, %s8
  %s11 = scalar_select 0, %s10, %s8
  $region1: #{state_encoder.1} parent=0
    #allocation2 [shape = 'u8[2048]{0}', space=vmem, size = 0x800, scoped, tag = 'output window, operand 0, single buffered']
    #allocation3 [shape = 's32[1]{0}', space=sflag, size = 0x4, scoped, tag = 'scoped memory for state_encoder.1']
    %12 = vsyncpa [#allocation3], 0
    // Predicated region
    $region2: #{state_encoder.1} parent=1 // pred_check
      _
    $region3: #{state_encoder.1} parent=1 // pred_check_branch
      %14 = sbr.rel (0) target = $region5
    $region4: #{state_encoder.1} parent=1 // pred_region
      _
    $region5: #{state_encoder.1} parent=1 // pred_fallthru
      _
    // Predicated region
    $region6: #{state_encoder.1} parent=1 // pred_check
      _
    $region7: #{state_encoder.1} parent=1 // pred_check_branch
      %16 = sbr.rel (0) target = $region9
    $region8: #{state_encoder.1} parent=1 // pred_region
      _
    $region9: #{state_encoder.1} parent=1 // pred_fallthru
      _
    // Predicated region
    $region10: #{state_encoder.1} parent=1 // pred_check
      _
    $region11: #{state_encoder.1} parent=1 // pred_check_branch
      %18 = sbr.rel (0) target = $region13
    $region12: #{state_encoder.1} parent=1 // pred_region
      _
    $region13: #{state_encoder.1} parent=1 // pred_fallthru
      _
    // Predicated region
    $region14: #{state_encoder.1} parent=1 // pred_check
      _
    $region15: #{state_encoder.1} parent=1 // pred_check_branch
      %20 = sbr.rel (0) target = $region17
    $region16: #{state_encoder.1} parent=1 // pred_region
      _
    $region17: #{state_encoder.1} parent=1 // pred_fallthru
      _
    // Predicated region
    $region18: #{state_encoder.1} parent=1 // pred_check
      _
    $region19: #{state_encoder.1} parent=1 // pred_check_branch
      %22 = sbr.rel (0) target = $region21
    $region20: #{state_encoder.1} parent=1 // pred_region
      _
    $region21: #{state_encoder.1} parent=1 // pred_fallthru
      _
    // Predicated region
    $region22: #{state_encoder.1} parent=1 // pred_check
      _
    $region23: #{state_encoder.1} parent=1 // pred_check_branch
      %24 = sbr.rel (0) target = $region25
    $region24: #{state_encoder.1} parent=1 // pred_region
      _
    $region25: #{state_encoder.1} parent=1 // pred_fallthru
      _
    // Predicated region
    $region26: #{state_encoder.1} parent=1 // pred_check
      _
    $region27: #{state_encoder.1} parent=1 // pred_check_branch
      %26 = sbr.rel (0) target = $region29
    $region28: #{state_encoder.1} parent=1 // pred_region
      _
    $region29: #{state_encoder.1} parent=1 // pred_fallthru
      _
    %v28 = vld [vmem:[%s0] sm:$0xff]
    %vm29 = vcmask 113664
    %v30 = vsel %vm29, %v28, 0.0
    %v31 = vpack.c.bf16 %v30, %v30
    %v32 = vld [vmem:[%s1] sm:$0xf]
    %v33 = vld [vmem:[%s1 + $0x4] sm:$0xf]
    %v34 = vld [vmem:[%s2] sm:$0x1]
    %v36 = vlaneseq
    %v37 = vshrl.u32 %v36, 7
    %v38 = vsub.s32 0, %v37
    %v39 = vrot.slane %v34, %v38
    %v43 = vunpack.c.l.b16 %v32
    %v44 = vunpack.c.l.b16 %v33
    %v45 = vpack.c.b16 %v44, %v43
    %vm47 = vcmask 130048
    %v49 = vsel %vm47, %v31, 0
    %51 = vmatprep.subr.bf16.mxu0 0
    %52 = vmatpush1.bf16.msra.mxu0 0
    %53 = vmatprep.subr.bf16.mxu0 0
    %54 = vmatpush1.bf16.msra.mxu0 0
    %55 = vmatprep.subr.bf16.mxu0 0
    %56 = vmatpush1.bf16.msra.mxu0 0
    %57 = vmatprep.subr.bf16.mxu0 0
    %58 = vmatpush1.bf16.msra.mxu0 0
    %59 = vmatprep.subr.bf16.mxu0 0
    %60 = vmatpush1.bf16.msra.mxu0 0
    %61 = vmatprep.subr.bf16.mxu0 0
    %62 = vmatpush1.bf16.msra.mxu0 0
    %63 = vmatprep.subr.bf16.mxu0 0
    %64 = vmatpush1.bf16.msra.mxu0 0
    %65 = vmatprep.subr.bf16.mxu0 0
    %66 = vmatpush1.bf16.msra.mxu0 %v45
    %67 = vmatprep.subr.bf16.mxu0 0
    %68 = vmatpush2.bf16.msra.mxu0 0
    %69 = vmatprep.subr.bf16.mxu0 0
    %70 = vmatpush2.bf16.msra.mxu0 0
    %71 = vmatprep.subr.bf16.mxu0 0
    %72 = vmatpush2.bf16.msra.mxu0 0
    %73 = vmatprep.subr.bf16.mxu0 0
    %74 = vmatpush2.bf16.msra.mxu0 0
    %75 = vmatprep.subr.bf16.mxu0 0
    %76 = vmatpush2.bf16.msra.mxu0 0
    %77 = vmatprep.subr.bf16.mxu0 0
    %78 = vmatpush2.bf16.msra.mxu0 0
    %79 = vmatprep.subr.bf16.mxu0 0
    %80 = vmatpush2.bf16.msra.mxu0 0
    %81 = vmatprep.subr.bf16.mxu0 0
    %82 = vmatpush2.bf16.msra.mxu0 0
    %83 = vmatprep.mubr.bf16.mxu0 0
    %84 = vmatmul.mubr.bf16.gmra.mxu0 %v49
    %v85 = vpop.f32.mrf.mxu0
    %v86 = vadd.f32 %v39, %v85
    %v87 = vpop.f32.mrf.mxu0
    %v88 = vpop.f32.mrf.mxu0
    %v89 = vpop.f32.mrf.mxu0
    %90 = vdwg.mxu0
    %v91 = vmax.f32 %v86, 0.0
    %v92 = vpack.c.bf16 %v91, %v91
    %v93 = vld [vmem:[%s3] sm:$0xf]
    %v94 = vld [vmem:[%s3 + $0x4] sm:$0xf]
    %v95 = vld [vmem:[%s3 + $0x8] sm:$0xf]
    %v96 = vld [vmem:[%s3 + $0xc] sm:$0xf]
    %v97 = vld [vmem:[%s3 + $0x10] sm:$0xf]
    %v98 = vld [vmem:[%s3 + $0x14] sm:$0xf]
    %v99 = vld [vmem:[%s3 + $0x18] sm:$0xf]
    %v100 = vld [vmem:[%s3 + $0x1c] sm:$0xf]
    %v101 = vld [vmem:[%s3 + $0x20] sm:$0xf]
    %v102 = vld [vmem:[%s3 + $0x24] sm:$0xf]
    %v103 = vld [vmem:[%s3 + $0x28] sm:$0xf]
    %v104 = vld [vmem:[%s3 + $0x2c] sm:$0xf]
    %v105 = vld [vmem:[%s3 + $0x30] sm:$0xf]
    %v106 = vld [vmem:[%s3 + $0x34] sm:$0xf]
    %v107 = vld [vmem:[%s3 + $0x38] sm:$0xf]
    %v108 = vld [vmem:[%s3 + $0x3c] sm:$0xf]
    %v109 = vld [vmem:[%s4] sm:$0x1]
    %v111 = vlaneseq
    %v112 = vshrl.u32 %v111, 7
    %v113 = vsub.s32 0, %v112
    %v114 = vrot.slane %v109, %v113
    %v132 = vunpack.c.l.b16 %v93
    %v133 = vunpack.c.l.b16 %v94
    %v134 = vunpack.c.l.b16 %v95
    %v135 = vunpack.c.l.b16 %v96
    %v136 = vunpack.c.l.b16 %v97
    %v137 = vunpack.c.l.b16 %v98
    %v138 = vunpack.c.l.b16 %v99
    %v139 = vunpack.c.l.b16 %v100
    %v140 = vunpack.c.l.b16 %v101
    %v141 = vunpack.c.l.b16 %v102
    %v142 = vunpack.c.l.b16 %v103
    %v143 = vunpack.c.l.b16 %v104
    %v144 = vunpack.c.l.b16 %v105
    %v145 = vunpack.c.l.b16 %v106
    %v146 = vunpack.c.l.b16 %v107
    %v147 = vunpack.c.l.b16 %v108
    %v148 = vpack.c.b16 %v133, %v132
    %v149 = vpack.c.b16 %v135, %v134
    %v150 = vpack.c.b16 %v137, %v136
    %v151 = vpack.c.b16 %v139, %v138
    %v152 = vpack.c.b16 %v141, %v140
    %v153 = vpack.c.b16 %v143, %v142
    %v154 = vpack.c.b16 %v145, %v144
    %v155 = vpack.c.b16 %v147, %v146
    %164 = vmatprep.subr.bf16.mxu0 0
    %165 = vmatpush1.bf16.msra.mxu0 %v155
    %166 = vmatprep.subr.bf16.mxu0 0
    %167 = vmatpush1.bf16.msra.mxu0 %v154
    %168 = vmatprep.subr.bf16.mxu0 0
    %169 = vmatpush1.bf16.msra.mxu0 %v153
    %170 = vmatprep.subr.bf16.mxu0 0
    %171 = vmatpush1.bf16.msra.mxu0 %v152
    %172 = vmatprep.subr.bf16.mxu0 0
    %173 = vmatpush1.bf16.msra.mxu0 %v151
    %174 = vmatprep.subr.bf16.mxu0 0
    %175 = vmatpush1.bf16.msra.mxu0 %v150
    %176 = vmatprep.subr.bf16.mxu0 0
    %177 = vmatpush1.bf16.msra.mxu0 %v149
    %178 = vmatprep.subr.bf16.mxu0 0
    %179 = vmatpush1.bf16.msra.mxu0 %v148
    %180 = vmatprep.subr.bf16.mxu0 0
    %181 = vmatpush2.bf16.msra.mxu0 0
    %182 = vmatprep.subr.bf16.mxu0 0
    %183 = vmatpush2.bf16.msra.mxu0 0
    %184 = vmatprep.subr.bf16.mxu0 0
    %185 = vmatpush2.bf16.msra.mxu0 0
    %186 = vmatprep.subr.bf16.mxu0 0
    %187 = vmatpush2.bf16.msra.mxu0 0
    %188 = vmatprep.subr.bf16.mxu0 0
    %189 = vmatpush2.bf16.msra.mxu0 0
    %190 = vmatprep.subr.bf16.mxu0 0
    %191 = vmatpush2.bf16.msra.mxu0 0
    %192 = vmatprep.subr.bf16.mxu0 0
    %193 = vmatpush2.bf16.msra.mxu0 0
    %194 = vmatprep.subr.bf16.mxu0 0
    %195 = vmatpush2.bf16.msra.mxu0 0
    %196 = vmatprep.mubr.bf16.mxu0 0
    %197 = vmatmul.mubr.bf16.gmra.mxu0 %v92
    %v198 = vpop.f32.mrf.mxu0
    %v199 = vadd.f32 %v114, %v198
    %v200 = vpop.f32.mrf.mxu0
    %v201 = vpop.f32.mrf.mxu0
    %v202 = vpop.f32.mrf.mxu0
    %203 = vdwg.mxu0
    %v204 = vmax.f32 %v199, 0.0
    %v205 = vpack.c.bf16 %v204, %v204
    %v206 = vld [vmem:[%s5] sm:$0xf]
    %v207 = vld [vmem:[%s5 + $0x4] sm:$0xf]
    %v208 = vld [vmem:[%s5 + $0x8] sm:$0xf]
    %v209 = vld [vmem:[%s5 + $0xc] sm:$0xf]
    %v210 = vld [vmem:[%s5 + $0x10] sm:$0xf]
    %v211 = vld [vmem:[%s5 + $0x14] sm:$0xf]
    %v212 = vld [vmem:[%s5 + $0x18] sm:$0xf]
    %v213 = vld [vmem:[%s5 + $0x1c] sm:$0xf]
    %v214 = vld [vmem:[%s5 + $0x20] sm:$0xf]
    %v215 = vld [vmem:[%s5 + $0x24] sm:$0xf]
    %v216 = vld [vmem:[%s5 + $0x28] sm:$0xf]
    %v217 = vld [vmem:[%s5 + $0x2c] sm:$0xf]
    %v218 = vld [vmem:[%s5 + $0x30] sm:$0xf]
    %v219 = vld [vmem:[%s5 + $0x34] sm:$0xf]
    %v220 = vld [vmem:[%s5 + $0x38] sm:$0xf]
    %v221 = vld [vmem:[%s5 + $0x3c] sm:$0xf]
    %v222 = vld [vmem:[%s6] sm:$0x1]
    %v224 = vlaneseq
    %v225 = vshrl.u32 %v224, 7
    %v226 = vsub.s32 0, %v225
    %v227 = vrot.slane %v222, %v226
    %v245 = vunpack.c.l.b16 %v206
    %v246 = vunpack.c.l.b16 %v207
    %v247 = vunpack.c.l.b16 %v208
    %v248 = vunpack.c.l.b16 %v209
    %v249 = vunpack.c.l.b16 %v210
    %v250 = vunpack.c.l.b16 %v211
    %v251 = vunpack.c.l.b16 %v212
    %v252 = vunpack.c.l.b16 %v213
    %v253 = vunpack.c.l.b16 %v214
    %v254 = vunpack.c.l.b16 %v215
    %v255 = vunpack.c.l.b16 %v216
    %v256 = vunpack.c.l.b16 %v217
    %v257 = vunpack.c.l.b16 %v218
    %v258 = vunpack.c.l.b16 %v219
    %v259 = vunpack.c.l.b16 %v220
    %v260 = vunpack.c.l.b16 %v221
    %v261 = vpack.c.b16 %v246, %v245
    %v262 = vpack.c.b16 %v248, %v247
    %v263 = vpack.c.b16 %v250, %v249
    %v264 = vpack.c.b16 %v252, %v251
    %v265 = vpack.c.b16 %v254, %v253
    %v266 = vpack.c.b16 %v256, %v255
    %v267 = vpack.c.b16 %v258, %v257
    %v268 = vpack.c.b16 %v260, %v259
    %277 = vmatprep.subr.bf16.mxu0 0
    %278 = vmatpush1.bf16.msra.mxu0 %v268
    %279 = vmatprep.subr.bf16.mxu0 0
    %280 = vmatpush1.bf16.msra.mxu0 %v267
    %281 = vmatprep.subr.bf16.mxu0 0
    %282 = vmatpush1.bf16.msra.mxu0 %v266
    %283 = vmatprep.subr.bf16.mxu0 0
    %284 = vmatpush1.bf16.msra.mxu0 %v265
    %285 = vmatprep.subr.bf16.mxu0 0
    %286 = vmatpush1.bf16.msra.mxu0 %v264
    %287 = vmatprep.subr.bf16.mxu0 0
    %288 = vmatpush1.bf16.msra.mxu0 %v263
    %289 = vmatprep.subr.bf16.mxu0 0
    %290 = vmatpush1.bf16.msra.mxu0 %v262
    %291 = vmatprep.subr.bf16.mxu0 0
    %292 = vmatpush1.bf16.msra.mxu0 %v261
    %293 = vmatprep.subr.bf16.mxu0 0
    %294 = vmatpush2.bf16.msra.mxu0 0
    %295 = vmatprep.subr.bf16.mxu0 0
    %296 = vmatpush2.bf16.msra.mxu0 0
    %297 = vmatprep.subr.bf16.mxu0 0
    %298 = vmatpush2.bf16.msra.mxu0 0
    %299 = vmatprep.subr.bf16.mxu0 0
    %300 = vmatpush2.bf16.msra.mxu0 0
    %301 = vmatprep.subr.bf16.mxu0 0
    %302 = vmatpush2.bf16.msra.mxu0 0
    %303 = vmatprep.subr.bf16.mxu0 0
    %304 = vmatpush2.bf16.msra.mxu0 0
    %305 = vmatprep.subr.bf16.mxu0 0
    %306 = vmatpush2.bf16.msra.mxu0 0
    %307 = vmatprep.subr.bf16.mxu0 0
    %308 = vmatpush2.bf16.msra.mxu0 0
    %309 = vmatprep.mubr.bf16.mxu0 0
    %310 = vmatmul.mubr.bf16.gmra.mxu0 %v205
    %v311 = vpop.f32.mrf.mxu0
    %v312 = vadd.f32 %v227, %v311
    %v313 = vpop.f32.mrf.mxu0
    %v314 = vpop.f32.mrf.mxu0
    %v315 = vpop.f32.mrf.mxu0
    %316 = vdwg.mxu0
    %v317 = vmax.f32 %v312, 0.0
    %v318 = vpack.c.bf16 %v317, %v317
    %vm319 = vcmask 519168
    %320 = vst.msk [vmem:[#allocation2] sm:$0xf] %vm319, %v318
    // Predicated region
    $region30: #{state_encoder.1} parent=1 // pred_check
      _
    $region31: #{state_encoder.1} parent=1 // pred_check_branch
      %322 = sbr.rel (0) target = $region33
    $region32: #{state_encoder.1} parent=1 // pred_region
      %s324 = ssub.s32 64, 64
      %325 = vsyncadd [#allocation3], %s324
      %s327 = sshll.u32 [#allocation2], 4
      %s328 = int_to_ptr.vmem [resolvable:$true] %s327
      %330 = dma.vmem_to_hbm [thread:$0]  %s328, 64, %s7, [#allocation3]
    $region33: #{state_encoder.1} parent=1 // pred_fallthru
      _
    // Predicated region
    $region34: #{state_encoder.1} parent=1 // pred_check
      _
    $region35: #{state_encoder.1} parent=1 // pred_check_branch
      %332 = sbr.rel (0) target = $region37
    $region36: #{state_encoder.1} parent=1 // pred_region
      %333 = dma.done [#allocation3], 64
    $region37: #{state_encoder.1} parent=1 // pred_fallthru
      _
    %334 = vsyncpa [#allocation3], 1

</llo_original>
